<compile_context>
chip_gen: v5e
topology: v5e:2x2
jax: 0.10.0
libtpu: 0.0.40
codegen_flags: <defaults>
</compile_context>

<pallas_src>
import jax
import jax.numpy as jnp
import numpy as np
from jax import lax
from jax.experimental import pallas as pl
from jax.experimental.pallas import tpu as pltpu


def _cca_kernel(x_ref, w1_ref, w2t_ref, o_ref):
    # x_ref:  (TB, C, HW)   w1_ref: (Ch, C)   w2t_ref: (Ch, C)   o_ref: (TB, C)
    x = x_ref[...]                                            # (TB, C, HW)
    tb = x.shape[0]
    inv_hw = 1.0 / x.shape[-1]

    # Both global pools in one pass over the lane-dense input block (XLU).
    avg = jnp.sum(x, axis=-1) * inv_hw                        # (TB, C)
    mx = jnp.max(x, axis=-1)                                  # (TB, C)

    # Batched MLP: stack both pooled branches and feed one well-shaped matmul.
    pooled = jnp.concatenate([avg, mx], axis=0)               # (2*TB, C)
    w1 = w1_ref[...]                                          # (Ch, C)
    h = lax.dot_general(pooled, w1,
                        dimension_numbers=(((1,), (1,)), ((), ())),
                        preferred_element_type=jnp.float32)   # (2*TB, Ch)
    h = jnp.maximum(h, 0.0)

    # fc2 is linear -> fc2(h_avg) + fc2(h_max) == fc2(h_avg + h_max)
    h_sum = h[:tb] + h[tb:]                                   # (TB, Ch)
    w2t = w2t_ref[...]                                        # (Ch, C)
    y = jnp.dot(h_sum, w2t,
                preferred_element_type=jnp.float32)           # (TB, C)

    o_ref[...] = jax.nn.sigmoid(y).astype(o_ref.dtype)


def _pick_tb(B, C, HW, target_bytes=4 << 20, itemsize=4):
    """Batch items per grid step: ~4 MiB input block, TB divides B."""
    per_item = C * max(HW, 128) * itemsize          # lane padding if HW < 128
    tb = int(max(1, min(B, target_bytes // per_item)))
    if tb >= B and B >= 2:
        # Whole batch fits in one block; split over >=2 grid steps (megacore)
        # only when each half still moves a non-trivial amount of data.
        half = (B + 1) // 2
        if B >= 16 or half * per_item >= (512 << 10):
            tb = half
    while B % tb != 0:                               # avoid partial blocks
        tb -= 1
    return tb


def channel_conv_attention(x_nchw, w1, w2):
    """x_nchw: (B, C, H, W); w1: (C//16, C); w2: (C, C//16) -> (B, C, 1, 1)."""
    B, C, H, W = x_nchw.shape
    Ch = w1.shape[0]
    HW = H * W
    x = x_nchw.reshape(B, C, HW)     # free: contiguous NCHW -> (B, C, HW)
    w2t = jnp.transpose(w2)          # (Ch, C): one-time tiny, lane-dense RHS

    TB = _pick_tb(B, C, HW)
    grid = (pl.cdiv(B, TB),)

    out = pl.pallas_call(
        _cca_kernel,
        out_shape=jax.ShapeDtypeStruct((B, C), x.dtype),
        grid_spec=pltpu.PrefetchScalarGridSpec(
            num_scalar_prefetch=0,
            grid=grid,
            in_specs=[
                pl.BlockSpec((TB, C, HW), lambda b: (b, 0, 0)),
                pl.BlockSpec((Ch, C), lambda b: (0, 0)),
                pl.BlockSpec((Ch, C), lambda b: (0, 0)),
            ],
            out_specs=pl.BlockSpec((TB, C), lambda b: (b, 0)),
        ),
        compiler_params=pltpu.CompilerParams(
            dimension_semantics=("parallel",)),      # shard batch over TCs
        cost_estimate=pl.CostEstimate(
            flops=6 * B * C * Ch,                    # 2 batched matmuls
            transcendentals=B * C,                   # sigmoid
            bytes_accessed=B * C * HW * 4 + 2 * C * Ch * 4 + B * C * 4),
    )(x, w1, w2t)
    return out.reshape(B, C, 1, 1)


def channel_conv_attention_ref(x_nchw, w1, w2):
    # Pure-JAX reference (matches PyTorch semantics of the module).
    avg = jnp.mean(x_nchw, axis=(2, 3), keepdims=True)       # (B, C, 1, 1)
    mx = jnp.max(x_nchw, axis=(2, 3), keepdims=True)         # (B, C, 1, 1)

    def mlp(v):
        h = jnp.maximum(jnp.einsum('oc,bcxy->boxy', w1, v), 0.0)
        return jnp.einsum('oc,bcxy->boxy', w2, h)

    return jax.nn.sigmoid(mlp(avg) + mlp(mx))


def init_params(key, in_planes):
    # Conv2d(in, in//16, 1, bias=False) and Conv2d(in//16, in, 1, bias=False)
    # weights in native PyTorch (out_ch, in_ch) layout (1x1 kernel squeezed).
    # NOTE: the module hardcodes //16 regardless of its `ratio` argument.
    hidden = in_planes // 16
    k1, k2 = jax.random.split(key)
    w1 = (0.1 * jax.random.normal(k1, (hidden, in_planes))).astype(jnp.float32)
    w2 = (0.1 * jax.random.normal(k2, (in_planes, hidden))).astype(jnp.float32)
    return w1, w2


if __name__ == "__main__":
    key = jax.random.PRNGKey(0)
    B, C, H, W = 2, 32, 16, 16           # C must be >= 16 (fc1 reduces by //16)
    kx, kp = jax.random.split(key)
    x = jax.random.normal(kx, (B, C, H, W), jnp.float32)
    w1, w2 = init_params(kp, C)

    out = jax.block_until_ready(channel_conv_attention(x, w1, w2))
    ref = jax.block_until_ready(channel_conv_attention_ref(x, w1, w2))

    assert out.shape == (B, C, 1, 1)
    np.testing.assert_allclose(np.asarray(out), np.asarray(ref),
                               rtol=1e-5, atol=1e-5)
    print("KERNEL_OK")
</pallas_src>

<mosaic_0001>
module attributes {stable_mosaic.version = 11 : i64} {
  func.func @_cca_kernel(%arg0: i32, %arg1: memref<2x32x256xf32, #tpu.memory_space<vmem>>, %arg2: memref<2x32xf32, #tpu.memory_space<vmem>>, %arg3: memref<2x32xf32, #tpu.memory_space<vmem>>, %arg4: memref<2x32xf32, #tpu.memory_space<vmem>>) attributes {dimension_semantics = [#tpu.dimension_semantics<parallel>], iteration_bounds = array<i64: 1>, scalar_prefetch = 0 : i64, scratch_operands = 0 : i64, tpu.core_type = #tpu.core_type<tc>, window_params = [{transform_indices = @transform_0, window_bounds = array<i64: 2, 32, 256>}, {pipeline_mode = #tpu.pipeline_mode<synchronous>, transform_indices = @transform_1, window_bounds = array<i64: 2, 32>}, {pipeline_mode = #tpu.pipeline_mode<synchronous>, transform_indices = @transform_2, window_bounds = array<i64: 2, 32>}, {transform_indices = @transform_3, window_bounds = array<i64: 2, 32>}]} {
    %c0 = arith.constant 0 : index
    %c0_0 = arith.constant 0 : index
    %c0_1 = arith.constant 0 : index
    %0 = vector.load %arg1[%c0, %c0_0, %c0_1] : memref<2x32x256xf32, #tpu.memory_space<vmem>>, vector<2x32x256xf32>
    %cst = arith.constant dense<0.000000e+00> : vector<2x32xf32>
    %1 = vector.multi_reduction <add>, %0, %cst [2] : vector<2x32x256xf32> to vector<2x32xf32>
    %cst_2 = arith.constant 3.906250e-03 : f32
    %2 = vector.broadcast %cst_2 : f32 to vector<2x32xf32>
    %3 = arith.mulf %1, %2 : vector<2x32xf32>
    %cst_3 = arith.constant dense<0xFF800000> : vector<2x32xf32>
    %4 = vector.multi_reduction <maximumf>, %0, %cst_3 [2] : vector<2x32x256xf32> to vector<2x32xf32>
    %5 = tpu.concatenate %3, %4 in 0 : vector<2x32xf32>, vector<2x32xf32> -> vector<4x32xf32>
    %c0_4 = arith.constant 0 : index
    %c0_5 = arith.constant 0 : index
    %6 = vector.load %arg2[%c0_4, %c0_5] : memref<2x32xf32, #tpu.memory_space<vmem>>, vector<2x32xf32>
    %cst_6 = arith.constant dense<0.000000e+00> : vector<4x2xf32>
    %7 = tpu.matmul %5, %6, %cst_6 {dimension_numbers = #tpu.dot_dimension_numbers<[1], [1], [0], [0], [0, 0, 1, 0], [], []>} : vector<4x32xf32>, vector<2x32xf32>, vector<4x2xf32> -> vector<4x2xf32>
    %cst_7 = arith.constant 0.000000e+00 : f32
    %8 = vector.broadcast %cst_7 : f32 to vector<4x2xf32>
    %9 = arith.maximumf %7, %8 : vector<4x2xf32>
    %10 = vector.extract_strided_slice %9 {offsets = [0, 0], sizes = [2, 2], strides = [1, 1]} : vector<4x2xf32> to vector<2x2xf32>
    %11 = vector.extract_strided_slice %9 {offsets = [2, 0], sizes = [2, 2], strides = [1, 1]} : vector<4x2xf32> to vector<2x2xf32>
    %12 = arith.addf %10, %11 : vector<2x2xf32>
    %c0_8 = arith.constant 0 : index
    %c0_9 = arith.constant 0 : index
    %13 = vector.load %arg3[%c0_8, %c0_9] : memref<2x32xf32, #tpu.memory_space<vmem>>, vector<2x32xf32>
    %cst_10 = arith.constant dense<0.000000e+00> : vector<2x32xf32>
    %14 = tpu.matmul %12, %13, %cst_10 {dimension_numbers = #tpu.dot_dimension_numbers<[1], [0], [0], [1], [0, 0, 1, 1], [], []>} : vector<2x2xf32>, vector<2x32xf32>, vector<2x32xf32> -> vector<2x32xf32>
    %15 = arith.negf %14 : vector<2x32xf32>
    %16 = math.exp %15 : vector<2x32xf32>
    %cst_11 = arith.constant 1.000000e+00 : f32
    %17 = vector.broadcast %cst_11 : f32 to vector<2x32xf32>
    %18 = arith.addf %17, %16 : vector<2x32xf32>
    %19 = arith.divf %17, %18 : vector<2x32xf32>
    %c0_12 = arith.constant 0 : index
    %c0_13 = arith.constant 0 : index
    %20 = vector.load %arg4[%c0_12, %c0_13] : memref<2x32xf32, #tpu.memory_space<vmem>>, vector<2x32xf32>
    tpu.vector_store %arg4[%c0_12, %c0_13], %19 {strides = array<i32>} : memref<2x32xf32, #tpu.memory_space<vmem>>, vector<2x32xf32>,
    return
  }
  func.func @transform_0(%arg0: i32) -> (i32, i32, i32) {
    %c0_i32 = arith.constant 0 : i32
    %c0_i32_0 = arith.constant 0 : i32
    %c0_i32_1 = arith.constant 0 : i32
    return %arg0, %c0_i32, %c0_i32_0 : i32, i32, i32
  }
  func.func @transform_1(%arg0: i32) -> (i32, i32) {
    %c0_i32 = arith.constant 0 : i32
    %c0_i32_0 = arith.constant 0 : i32
    %c0_i32_1 = arith.constant 0 : i32
    return %c0_i32, %c0_i32_0 : i32, i32
  }
  func.func @transform_2(%arg0: i32) -> (i32, i32) {
    %c0_i32 = arith.constant 0 : i32
    %c0_i32_0 = arith.constant 0 : i32
    %c0_i32_1 = arith.constant 0 : i32
    return %c0_i32, %c0_i32_0 : i32, i32
  }
  func.func @transform_3(%arg0: i32) -> (i32, i32) {
    %c0_i32 = arith.constant 0 : i32
    %c0_i32_0 = arith.constant 0 : i32
    return %arg0, %c0_i32 : i32, i32
  }
}

</mosaic_0001>

<llo_original>
// kernel: tpu_custom_call.1
$region0: #{tpu_custom_call.1}
  #allocation0 [shape = 'u32[]', space=smem, size = 0x4, offset = 0x4, fixed_abs, tag = 'smem constant byte address 0x4 - core index']
  #allocation1 [shape = 'u32[72,128]{1,0:T(1,128)}', space=vmem, size = 0x9000, scoped, tag = 'internal scratch']
  %s0 = inlined_call_operand.hbm [shape: f32[2,32,256], index: 0, kind: input, shape index: {}]
  %s1 = inlined_call_operand.hbm [shape: f32[2,32], index: 1, kind: input, shape index: {}]
  %s2 = inlined_call_operand.hbm [shape: f32[2,32], index: 2, kind: input, shape index: {}]
  %s3 = inlined_call_operand.hbm [shape: f32[2,32], index: 3, kind: output, shape index: {}]
  %s4 = sld [smem:[#allocation0]]
  $region34: #{tpu_custom_call.1} parent=0
    _
  %s6 = ssub.s32 1, %s4
  %s7 = scalar_select 0, %s6, %s4
  $region1: #{tpu_custom_call.1} parent=0
    #allocation2 [shape = 'u8[65536]{0}', space=vmem, size = 0x10000, scoped, tag = 'input window, operand 0, single buffered']
    #allocation3 [shape = 's32[1]{0}', space=sflag, size = 0x4, scoped, tag = 'scoped memory for tpu_custom_call.1']
    #allocation4 [shape = 's32[1]{0}', space=sflag, size = 0x4, scoped, tag = 'scoped memory for tpu_custom_call.1']
    #allocation5 [shape = 'u8[1024]{0}', space=vmem, size = 0x400, scoped, tag = 'input window, operand 1, single buffered']
    #allocation6 [shape = 's32[1]{0}', space=sflag, size = 0x4, scoped, tag = 'scoped memory for tpu_custom_call.1']
    #allocation7 [shape = 'u8[1024]{0}', space=vmem, size = 0x400, scoped, tag = 'input window, operand 2, single buffered']
    #allocation8 [shape = 'u8[1024]{0}', space=vmem, size = 0x400, scoped, tag = 'output window, operand 0, single buffered']
    %8 = vsyncpa [#allocation3], 0
    %9 = vsyncpa [#allocation6], 0
    %10 = vsyncpa [#allocation4], 0
    // Predicated region
    $region2: #{tpu_custom_call.1} parent=1 // pred_check
      _
    $region3: #{tpu_custom_call.1} parent=1 // pred_check_branch
      %12 = sbr.rel (0) target = $region5
    $region4: #{tpu_custom_call.1} parent=1 // pred_region
      %14 = vsyncadd [#allocation3], 0
      %s15 = sshll.u32 %s0, 4
      %s16 = int_to_ptr.hbm [resolvable:$true] %s15
      %s17 = sshll.u32 [#allocation2], 4
      %s18 = int_to_ptr.vmem [resolvable:$true] %s17
      %23 = dma.hbm_to_vmem [thread:$0]  %s16, 2048, %s18, [#allocation3], 256, 256, 16
    $region5: #{tpu_custom_call.1} parent=1 // pred_fallthru
      _
    // Predicated region
    $region6: #{tpu_custom_call.1} parent=1 // pred_check
      _
    $region7: #{tpu_custom_call.1} parent=1 // pred_check_branch
      %25 = sbr.rel (0) target = $region9
    $region8: #{tpu_custom_call.1} parent=1 // pred_region
      %27 = vsyncadd [#allocation6], 0
      %s29 = sshll.u32 %s1, 4
      %s30 = int_to_ptr.hbm [resolvable:$true] %s29
      %s31 = sshll.u32 [#allocation5], 4
      %s32 = int_to_ptr.vmem [resolvable:$true] %s31
      %34 = dma.hbm_to_vmem [thread:$0]  %s30, 32, %s32, [#allocation6]
    $region9: #{tpu_custom_call.1} parent=1 // pred_fallthru
      _
    // Predicated region
    $region10: #{tpu_custom_call.1} parent=1 // pred_check
      _
    $region11: #{tpu_custom_call.1} parent=1 // pred_check_branch
      %36 = sbr.rel (0) target = $region13
    $region12: #{tpu_custom_call.1} parent=1 // pred_region
      %38 = vsyncadd [#allocation6], 0
      %s40 = sshll.u32 %s2, 4
      %s41 = int_to_ptr.hbm [resolvable:$true] %s40
      %s42 = sshll.u32 [#allocation7], 4
      %s43 = int_to_ptr.vmem [resolvable:$true] %s42
      %45 = dma.hbm_to_vmem [thread:$0]  %s41, 32, %s43, [#allocation6]
    $region13: #{tpu_custom_call.1} parent=1 // pred_fallthru
      _
    // Predicated region
    $region14: #{tpu_custom_call.1} parent=1 // pred_check
      _
    $region15: #{tpu_custom_call.1} parent=1 // pred_check_branch
      %47 = sbr.rel (0) target = $region17
    $region16: #{tpu_custom_call.1} parent=1 // pred_region
      %49 = dma.done [#allocation3], 2048
    $region17: #{tpu_custom_call.1} parent=1 // pred_fallthru
      _
    // Predicated region
    $region18: #{tpu_custom_call.1} parent=1 // pred_check
      _
    $region19: #{tpu_custom_call.1} parent=1 // pred_check_branch
      %51 = sbr.rel (0) target = $region21
    $region20: #{tpu_custom_call.1} parent=1 // pred_region
      %53 = dma.done [#allocation6], 32
    $region21: #{tpu_custom_call.1} parent=1 // pred_fallthru
      _
    // Predicated region
    $region22: #{tpu_custom_call.1} parent=1 // pred_check
      _
    $region23: #{tpu_custom_call.1} parent=1 // pred_check_branch
      %55 = sbr.rel (0) target = $region25
    $region24: #{tpu_custom_call.1} parent=1 // pred_region
      %57 = dma.done [#allocation6], 32
    $region25: #{tpu_custom_call.1} parent=1 // pred_fallthru
      _
    %v58 = vld [vmem:[#allocation2] sm:$0xff]
    %v59 = vld [vmem:[#allocation2 + $0x8] sm:$0xff]
    %v60 = vld [vmem:[#allocation2 + $0x10] sm:$0xff]
    %v61 = vld [vmem:[#allocation2 + $0x18] sm:$0xff]
    %v62 = vld [vmem:[#allocation2 + $0x20] sm:$0xff]
    %v63 = vld [vmem:[#allocation2 + $0x28] sm:$0xff]
    %v64 = vld [vmem:[#allocation2 + $0x30] sm:$0xff]
    %v65 = vld [vmem:[#allocation2 + $0x38] sm:$0xff]
    %v66 = vld [vmem:[#allocation2 + $0x40] sm:$0xff]
    %v67 = vld [vmem:[#allocation2 + $0x48] sm:$0xff]
    %v68 = vld [vmem:[#allocation2 + $0x50] sm:$0xff]
    %v69 = vld [vmem:[#allocation2 + $0x58] sm:$0xff]
    %v70 = vld [vmem:[#allocation2 + $0x60] sm:$0xff]
    %v71 = vld [vmem:[#allocation2 + $0x68] sm:$0xff]
    %v72 = vld [vmem:[#allocation2 + $0x70] sm:$0xff]
    %v73 = vld [vmem:[#allocation2 + $0x78] sm:$0xff]
    %v74 = vadd.f32 %v58, %v59
    %75 = vadd.xlane.f32.xlu0 %v74
    %v76 = vpop.xlane.xlu0 %75
    %v77 = vadd.f32 %v60, %v61
    %78 = vadd.xlane.f32.xlu0 %v77
    %v79 = vpop.xlane.xlu0 %78
    %v80 = vadd.f32 %v62, %v63
    %81 = vadd.xlane.f32.xlu0 %v80
    %v82 = vpop.xlane.xlu0 %81
    %v83 = vadd.f32 %v64, %v65
    %84 = vadd.xlane.f32.xlu0 %v83
    %v85 = vpop.xlane.xlu0 %84
    %v86 = vadd.f32 %v66, %v67
    %87 = vadd.xlane.f32.xlu0 %v86
    %v88 = vpop.xlane.xlu0 %87
    %v89 = vadd.f32 %v68, %v69
    %90 = vadd.xlane.f32.xlu0 %v89
    %v91 = vpop.xlane.xlu0 %90
    %v92 = vadd.f32 %v70, %v71
    %93 = vadd.xlane.f32.xlu0 %v92
    %v94 = vpop.xlane.xlu0 %93
    %v95 = vadd.f32 %v72, %v73
    %96 = vadd.xlane.f32.xlu0 %v95
    %v97 = vpop.xlane.xlu0 %96
    %v98 = vmul.f32 %v76, 0.00390625
    %v99 = vmul.f32 %v79, 0.00390625
    %v100 = vmul.f32 %v82, 0.00390625
    %v101 = vmul.f32 %v85, 0.00390625
    %v102 = vmul.f32 %v88, 0.00390625
    %v103 = vmul.f32 %v91, 0.00390625
    %v104 = vmul.f32 %v94, 0.00390625
    %v105 = vmul.f32 %v97, 0.00390625
    %v106 = vmax.f32 %v58, %v59
    %107 = vmax.xlane.f32.xlu0 %v106
    %v108 = vpop.xlane.xlu0 %107
    %v109 = vmax.f32 %v60, %v61
    %110 = vmax.xlane.f32.xlu0 %v109
    %v111 = vpop.xlane.xlu0 %110
    %v112 = vmax.f32 %v62, %v63
    %113 = vmax.xlane.f32.xlu0 %v112
    %v114 = vpop.xlane.xlu0 %113
    %v115 = vmax.f32 %v64, %v65
    %116 = vmax.xlane.f32.xlu0 %v115
    %v117 = vpop.xlane.xlu0 %116
    %v118 = vmax.f32 %v66, %v67
    %119 = vmax.xlane.f32.xlu0 %v118
    %v120 = vpop.xlane.xlu0 %119
    %v121 = vmax.f32 %v68, %v69
    %122 = vmax.xlane.f32.xlu0 %v121
    %v123 = vpop.xlane.xlu0 %122
    %v124 = vmax.f32 %v70, %v71
    %125 = vmax.xlane.f32.xlu0 %v124
    %v126 = vpop.xlane.xlu0 %125
    %v127 = vmax.f32 %v72, %v73
    %128 = vmax.xlane.f32.xlu0 %v127
    %v129 = vpop.xlane.xlu0 %128
    %v138 = vlaneseq
    %v139 = vand.u32 %v138, 127
    %v140 = vperm.slane %v98, %v139
    %v141 = vadd.s32 %v139, 4294967288
    %v142 = vperm.slane %v99, %v141
    %vm143 = vcmask 130112
    %v144 = vsel %vm143, %v142, %v140
    %v145 = vadd.s32 %v139, 4294967280
    %v146 = vperm.slane %v100, %v145
    %vm147 = vcmask 195712
    %v148 = vsel %vm147, %v146, %v144
    %v149 = vadd.s32 %v139, 4294967272
    %v150 = vperm.slane %v101, %v149
    %vm151 = vcmask 261312
    %v152 = vsel %vm151, %v150, %v148
    %v153 = vperm.slane %v102, %v139
    %v154 = vperm.slane %v103, %v141
    %v155 = vsel %vm143, %v154, %v153
    %v156 = vperm.slane %v104, %v145
    %v157 = vsel %vm147, %v156, %v155
    %v158 = vperm.slane %v105, %v149
    %v159 = vsel %vm151, %v158, %v157
    %vm160 = vcmask 1041409
    %v161 = vsel %vm160, %v159, %v152
    %v171 = vperm.slane %v108, %v139
    %v172 = vperm.slane %v111, %v141
    %v173 = vsel %vm143, %v172, %v171
    %v174 = vperm.slane %v114, %v145
    %v175 = vsel %vm147, %v174, %v173
    %v176 = vperm.slane %v117, %v149
    %v177 = vsel %vm151, %v176, %v175
    %v178 = vperm.slane %v120, %v139
    %v179 = vperm.slane %v123, %v141
    %v180 = vsel %vm143, %v179, %v178
    %v181 = vperm.slane %v126, %v145
    %v182 = vsel %vm147, %v181, %v180
    %v183 = vperm.slane %v129, %v149
    %v184 = vsel %vm151, %v183, %v182
    %vm185 = vcmask 1043459
    %v186 = vsel %vm185, %v184, %v177
    %vm188 = vcmask 1041408
    %v189 = vsel %vm188, %v161, %v186
    %v190 = vld [vmem:[#allocation5] sm:$0x3]
    %vm191 = vcmask 261120
    %v193 = vsel %vm191, %v189, 0
    %v196 = vsel %vm191, %v190, 0
    %198 = vmatpush.xpose.msra.mxu0 0.0
    %199 = vmatpush.xpose.msra.mxu0 0.0
    %200 = vmatpush.xpose.msra.mxu0 0.0
    %201 = vmatpush.xpose.msra.mxu0 0.0
    %202 = vmatpush.xpose.msra.mxu0 0.0
    %203 = vmatpush.xpose.msra.mxu0 0.0
    %204 = vmatpush.xpose.msra.mxu0 0.0
    %205 = vmatpush.xpose.msra.mxu0 0.0
    %206 = vmatpush.xpose.msra.mxu0 0.0
    %207 = vmatpush.xpose.msra.mxu0 0.0
    %208 = vmatpush.xpose.msra.mxu0 0.0
    %209 = vmatpush.xpose.msra.mxu0 0.0
    %210 = vmatpush.xpose.msra.mxu0 0.0
    %211 = vmatpush.xpose.msra.mxu0 0.0
    %212 = vmatpush.xpose.msra.mxu0 0.0
    %213 = vmatpush.xpose.msra.mxu0 %v196
    %214 = vmatmul.f32.gmra.mxu0 %v193
    %v215 = vpop.f32.mrf.mxu0
    %v216 = vadd.f32 0.0, %v215
    %217 = vdwg.mxu0
    %v218 = vmax.f32 %v216, 0.0
    %v220 = vrot.slane %v218, 2
    %v222 = vadd.f32 %v218, %v220
    %v223 = vld [vmem:[#allocation7] sm:$0x3]
    %vm224 = vcmask 15360
    %v226 = vsel %vm224, %v222, 0
    %v229 = vsel %vm188, %v223, 0
    %231 = vmatpush.msra.mxu0 0.0
    %232 = vmatpush.msra.mxu0 0.0
    %233 = vmatpush.msra.mxu0 0.0
    %234 = vmatpush.msra.mxu0 0.0
    %235 = vmatpush.msra.mxu0 0.0
    %236 = vmatpush.msra.mxu0 0.0
    %237 = vmatpush.msra.mxu0 0.0
    %238 = vmatpush.msra.mxu0 0.0
    %239 = vmatpush.msra.mxu0 0.0
    %240 = vmatpush.msra.mxu0 0.0
    %241 = vmatpush.msra.mxu0 0.0
    %242 = vmatpush.msra.mxu0 0.0
    %243 = vmatpush.msra.mxu0 0.0
    %244 = vmatpush.msra.mxu0 0.0
    %245 = vmatpush.msra.mxu0 0.0
    %246 = vmatpush.msra.mxu0 %v229
    %247 = vmatmul.f32.gmra.mxu0 %v226
    %v248 = vpop.f32.mrf.mxu0
    %v249 = vadd.f32 0.0, %v248
    %250 = vdwg.mxu0
    %v251 = vxor.u32 %v249, 2147483648
    %v252 = vmul.f32 %v251, 1.442695
    %v253 = vpow.pop %v252
    %v254 = vadd.f32 %v253, 1.0
    %v255 = vrcp.pop %v254
    %v256 = vmul.f32 %v254, %v255
    %v257 = vsub.f32 1.0, %v256
    %v258 = vmul.f32 %v255, %v257
    %v259 = vadd.f32 %v255, %v258
    %vm260 = vweird.f32 %v254
    %vm261 = vweird.f32 %v255
    %vm262 = vmor %vm260, %vm261
    %v263 = vsel %vm262, %v255, %v259
    %v264 = vand.u32 2147483647, %v254
    %vm265 = vcmp.eq.f32.partialorder %v264, 8.507059e+37
    %v266 = vand.u32 %v254, 2147483648
    %v267 = vor.u32 1.1754944e-38, %v266
    %v268 = vsel %vm265, %v267, %v263
    %v269 = vmul.f32 1.0, %v268
    %vm270 = vcmask 254976
    %271 = vst.msk [vmem:[#allocation8] sm:$0x3] %vm270, %v269
    // Predicated region
    $region26: #{tpu_custom_call.1} parent=1 // pred_check
      _
    $region27: #{tpu_custom_call.1} parent=1 // pred_check_branch
      %273 = sbr.rel (0) target = $region29
    $region28: #{tpu_custom_call.1} parent=1 // pred_region
      %275 = vsyncadd [#allocation4], 0
      %s277 = sshll.u32 [#allocation8], 4
      %s278 = int_to_ptr.vmem [resolvable:$true] %s277
      %s279 = sshll.u32 %s3, 4
      %s280 = int_to_ptr.hbm [resolvable:$true] %s279
      %282 = dma.vmem_to_hbm [thread:$0]  %s278, 32, %s280, [#allocation4]
    $region29: #{tpu_custom_call.1} parent=1 // pred_fallthru
      _
    // Predicated region
    $region30: #{tpu_custom_call.1} parent=1 // pred_check
      _
    $region31: #{tpu_custom_call.1} parent=1 // pred_check_branch
      %284 = sbr.rel (0) target = $region33
    $region32: #{tpu_custom_call.1} parent=1 // pred_region
      %286 = dma.done [#allocation4], 32
    $region33: #{tpu_custom_call.1} parent=1 // pred_fallthru
      _
    %287 = vsyncpa [#allocation3], 1
    %288 = vsyncpa [#allocation6], 1
    %289 = vsyncpa [#allocation4], 1

</llo_original>
